<compile_context>
chip_gen: v5e
topology: v5e:2x2
jax: 0.10.0
libtpu: 0.0.40
codegen_flags: <defaults>
</compile_context>

<pallas_src>
import math

import jax
import jax.numpy as jnp
from jax.experimental import pallas as pl
from jax.experimental.pallas import tpu as pltpu


def _round_up(n, m):
    return ((n + m - 1) // m) * m


def _vmem_budget_bytes():
    """Generation-aware VMEM budget (v7x: 64 MiB/TC, v5e/v6e: 128 MiB)."""
    cap = 64 * 1024 * 1024  # conservative fallback (v7x physical)
    try:
        info = pltpu.get_tpu_info()
        c = getattr(info, "vmem_capacity_bytes", None)
        if c:
            cap = int(c)
    except Exception:
        pass
    # ~60% of physical, never below the 32 MiB that is known-safe everywhere
    # (v5e's scoped default is only 16 MiB, so we always set it explicitly).
    return max(min((cap * 6) // 10, 96 * 1024 * 1024), 32 * 1024 * 1024)


def _value_kernel(x_ref, w1_ref, p_ref, out_ref):
    x = x_ref[...]                      # (TB, S)   compute dtype (bf16/f32)
    w1 = w1_ref[...]                    # (S, H)    compute dtype
    p = p_ref[...]                      # (2, H+1)  f32: [b1|b2] ; [w2^T|0]
    h = w1.shape[1]

    b1 = p[0:1, :h]                     # (1, H)
    b2 = p[0:1, h:]                     # (1, 1)
    w2_row = p[1:2, :h]                 # (1, H)

    # fc1 on the MXU with f32 accumulation; relu on the VPU.
    h1 = jnp.dot(x, w1, preferred_element_type=jnp.float32) + b1
    h1 = jnp.maximum(h1, 0.0)

    # fc2 (output width 1): VPU multiply + XLU lane reduction instead of an
    # N=1 MXU matmul (no second systolic weight push per grid step).
    v = jnp.sum(h1 * w2_row, axis=-1, keepdims=True) + b2
    out_ref[...] = v.astype(out_ref.dtype)


def _choose_batch_tile(B, S, H, x_bytes, vmem_budget, block_b_max):
    sub = 16 if x_bytes == 2 else 8             # sublane packing multiple
    weight_bytes = S * H * x_bytes + 2 * (H + 1) * 4
    per_row = 2 * S * x_bytes + 2 * 4           # double-buffered x + out rows
    avail = max(vmem_budget - weight_bytes, 8 * per_row)
    tb = (avail // per_row) // sub * sub        # largest tile fitting budget
    tb = min(tb, block_b_max)
    tb = min(tb, _round_up(B, sub))             # never bigger than needed
    if B > 8:
        # Keep >= 2 grid steps so the "parallel" batch axis can feed both
        # TensorCores on v7x (harmless on single-TC v5e/v6e).
        tb = min(tb, _round_up(pl.cdiv(B, 2), sub))
    return max(int(tb), sub)


def value_net_forward(x, params, *, compute_dtype=jnp.bfloat16, block_b_max=4096):
    """x: (B, state_dim). params = (w1, b1, w2, b2), weights stored transposed
    as (in_features, out_features). Returns (B, 1) float32 values."""
    w1, b1, w2, b2 = params
    B, S = x.shape
    H = w1.shape[1]

    # Pack the tiny per-feature params into one resident f32 array:
    #   row 0 = [b1 | b2], row 1 = [w2^T | 0]
    row0 = jnp.concatenate([b1.reshape(1, H), b2.reshape(1, 1)], axis=1)
    row1 = jnp.concatenate([w2.reshape(1, H), jnp.zeros((1, 1), w2.dtype)], axis=1)
    packed = jnp.concatenate([row0, row1], axis=0).astype(jnp.float32)  # (2, H+1)

    # bf16 activations/weights halve the dominant x DMA traffic and are the
    # MXU's native input type on v6e/v7x; accumulation stays f32 in-kernel.
    xc = x.astype(compute_dtype)
    w1c = w1.astype(compute_dtype)
    x_bytes = jnp.dtype(compute_dtype).itemsize

    vmem_budget = _vmem_budget_bytes()
    tb = _choose_batch_tile(B, S, H, x_bytes, vmem_budget, block_b_max)
    grid = (pl.cdiv(B, tb),)

    weight_bytes = S * H * x_bytes + 2 * (H + 1) * 4
    need = weight_bytes + 2 * tb * (S * x_bytes + 4) + (1 << 20)
    vmem_limit = int(max(vmem_budget, need))

    cost = pl.CostEstimate(
        flops=2 * B * H * (S + 1),
        transcendentals=0,
        bytes_accessed=B * S * x_bytes + weight_bytes + B * 4,
    )

    out = pl.pallas_call(
        _value_kernel,
        out_shape=jax.ShapeDtypeStruct((B, 1), jnp.float32),
        grid_spec=pltpu.PrefetchScalarGridSpec(
            num_scalar_prefetch=0,
            grid=grid,
            in_specs=[
                pl.BlockSpec((tb, S), lambda i: (i, 0)),       # x: batch-tiled
                pl.BlockSpec((S, H), lambda i: (0, 0)),        # w1: VMEM-resident
                pl.BlockSpec((2, H + 1), lambda i: (0, 0)),    # packed b1|b2, w2
            ],
            out_specs=pl.BlockSpec((tb, 1), lambda i: (i, 0)),
        ),
        compiler_params=pltpu.CompilerParams(
            dimension_semantics=("parallel",),    # batch axis -> 2 TCs on v7x
            vmem_limit_bytes=vmem_limit,
        ),
        cost_estimate=cost,
    )(xc, w1c, packed)
    return out


def init_params(key, state_dim, hidden_dim):
    """Deterministic synthetic parameters mirroring torch.nn.Linear init;
    weights stored transposed as (in_features, out_features)."""
    keys = jax.random.split(key, 4)

    def lin(kw, kb, fan_in, fan_out):
        bound = 1.0 / math.sqrt(fan_in)
        w = jax.random.uniform(kw, (fan_in, fan_out), jnp.float32, -bound, bound)
        b = jax.random.uniform(kb, (1, fan_out), jnp.float32, -bound, bound)
        return w, b

    w1, b1 = lin(keys[0], keys[1], state_dim, hidden_dim)
    w2, b2 = lin(keys[2], keys[3], hidden_dim, 1)
    return (w1, b1, w2, b2)


if __name__ == "__main__":
    batch, state_dim, hidden_dim = 8, 16, 32

    key = jax.random.PRNGKey(0)
    k_x, k_p = jax.random.split(key)
    x = jax.random.normal(k_x, (batch, state_dim), jnp.float32)
    params = init_params(k_p, state_dim, hidden_dim)

    v = jax.jit(value_net_forward)(x, params)
    jax.block_until_ready(v)
    assert v.shape == (batch, 1)

    # Pure-JAX reference with the same bf16 quantization of x / w1 (f32
    # accumulation); fc2 is pure f32 in both paths.
    w1, b1, w2, b2 = params
    xq = x.astype(jnp.bfloat16).astype(jnp.float32)
    w1q = w1.astype(jnp.bfloat16).astype(jnp.float32)
    ref = jnp.maximum(xq @ w1q + b1, 0.0) @ w2 + b2
    assert bool(jnp.all(jnp.isfinite(v)))
    assert bool(jnp.allclose(v, ref, atol=1e-2, rtol=1e-2))
    print("KERNEL_OK")
</pallas_src>

<mosaic_0001>
module attributes {stable_mosaic.version = 11 : i64} {
  func.func @_value_kernel(%arg0: i32, %arg1: memref<16x16xbf16, #tpu.memory_space<vmem>>, %arg2: memref<16x32xbf16, #tpu.memory_space<vmem>>, %arg3: memref<2x33xf32, #tpu.memory_space<vmem>>, %arg4: memref<16x1xf32, #tpu.memory_space<vmem>>) attributes {dimension_semantics = [#tpu.dimension_semantics<parallel>], iteration_bounds = array<i64: 1>, scalar_prefetch = 0 : i64, scratch_operands = 0 : i64, tpu.core_type = #tpu.core_type<tc>, window_params = [{transform_indices = @transform_0, window_bounds = array<i64: 16, 16>}, {pipeline_mode = #tpu.pipeline_mode<synchronous>, transform_indices = @transform_1, window_bounds = array<i64: 16, 32>}, {pipeline_mode = #tpu.pipeline_mode<synchronous>, transform_indices = @transform_2, window_bounds = array<i64: 2, 33>}, {transform_indices = @transform_3, window_bounds = array<i64: 16, 1>}]} {
    %c0 = arith.constant 0 : index
    %c0_0 = arith.constant 0 : index
    %0 = vector.load %arg1[%c0, %c0_0] : memref<16x16xbf16, #tpu.memory_space<vmem>>, vector<16x16xbf16>
    %c0_1 = arith.constant 0 : index
    %c0_2 = arith.constant 0 : index
    %1 = vector.load %arg2[%c0_1, %c0_2] : memref<16x32xbf16, #tpu.memory_space<vmem>>, vector<16x32xbf16>
    %c0_3 = arith.constant 0 : index
    %c0_4 = arith.constant 0 : index
    %2 = vector.load %arg3[%c0_3, %c0_4] : memref<2x33xf32, #tpu.memory_space<vmem>>, vector<2x33xf32>
    %3 = vector.extract_strided_slice %2 {offsets = [0, 0], sizes = [1, 32], strides = [1, 1]} : vector<2x33xf32> to vector<1x32xf32>
    %4 = vector.extract_strided_slice %2 {offsets = [0, 32], sizes = [1, 1], strides = [1, 1]} : vector<2x33xf32> to vector<1x1xf32>
    %5 = vector.extract_strided_slice %2 {offsets = [1, 0], sizes = [1, 32], strides = [1, 1]} : vector<2x33xf32> to vector<1x32xf32>
    %cst = arith.constant dense<0.000000e+00> : vector<16x32xf32>
    %6 = tpu.matmul %0, %1, %cst {dimension_numbers = #tpu.dot_dimension_numbers<[1], [0], [0], [1], [0, 0, 1, 1], [], []>} : vector<16x16xbf16>, vector<16x32xbf16>, vector<16x32xf32> -> vector<16x32xf32>
    %7 = vector.broadcast %3 : vector<1x32xf32> to vector<16x32xf32>
    %8 = arith.addf %6, %7 : vector<16x32xf32>
    %cst_5 = arith.constant 0.000000e+00 : f32
    %9 = vector.broadcast %cst_5 : f32 to vector<16x32xf32>
    %10 = arith.maximumf %8, %9 : vector<16x32xf32>
    %11 = vector.broadcast %5 : vector<1x32xf32> to vector<16x32xf32>
    %12 = arith.mulf %10, %11 : vector<16x32xf32>
    %cst_6 = arith.constant dense<0.000000e+00> : vector<16xf32>
    %13 = vector.multi_reduction <add>, %12, %cst_6 [1] : vector<16x32xf32> to vector<16xf32>
    %14 = vector.shape_cast %13 : vector<16xf32> to vector<16x1xf32>
    %15 = vector.broadcast %4 : vector<1x1xf32> to vector<16x1xf32>
    %16 = arith.addf %14, %15 : vector<16x1xf32>
    %c0_7 = arith.constant 0 : index
    %c0_8 = arith.constant 0 : index
    %17 = vector.load %arg4[%c0_7, %c0_8] : memref<16x1xf32, #tpu.memory_space<vmem>>, vector<16x1xf32>
    tpu.vector_store %arg4[%c0_7, %c0_8], %16 {strides = array<i32>} : memref<16x1xf32, #tpu.memory_space<vmem>>, vector<16x1xf32>,
    return
  }
  func.func @transform_0(%arg0: i32) -> (i32, i32) {
    %c0_i32 = arith.constant 0 : i32
    %c0_i32_0 = arith.constant 0 : i32
    return %arg0, %c0_i32 : i32, i32
  }
  func.func @transform_1(%arg0: i32) -> (i32, i32) {
    %c0_i32 = arith.constant 0 : i32
    %c0_i32_0 = arith.constant 0 : i32
    %c0_i32_1 = arith.constant 0 : i32
    return %c0_i32, %c0_i32_0 : i32, i32
  }
  func.func @transform_2(%arg0: i32) -> (i32, i32) {
    %c0_i32 = arith.constant 0 : i32
    %c0_i32_0 = arith.constant 0 : i32
    %c0_i32_1 = arith.constant 0 : i32
    return %c0_i32, %c0_i32_0 : i32, i32
  }
  func.func @transform_3(%arg0: i32) -> (i32, i32) {
    %c0_i32 = arith.constant 0 : i32
    %c0_i32_0 = arith.constant 0 : i32
    return %arg0, %c0_i32 : i32, i32
  }
}

</mosaic_0001>

<llo_original>
// kernel: value_net_forward.1
$region0: #{value_net_forward.1}
  #allocation0 [shape = 'u32[]', space=smem, size = 0x4, offset = 0x4, fixed_abs, tag = 'smem constant byte address 0x4 - core index']
  #allocation1 [shape = 'u32[72,128]{1,0:T(1,128)}', space=vmem, size = 0x9000, scoped, tag = 'internal scratch']
  %s0 = inlined_call_operand.vmem [shape: bf16[8,16], index: 0, kind: input, shape index: {}]
  %s1 = inlined_call_operand.vmem [shape: bf16[16,32], index: 1, kind: input, shape index: {}]
  %s2 = inlined_call_operand.vmem [shape: f32[2,33], index: 2, kind: input, shape index: {}]
  %s3 = inlined_call_operand.vmem [shape: f32[8,1], index: 3, kind: output, shape index: {}]
  %s4 = sld [smem:[#allocation0]]
  $region56: #{value_net_forward.1} parent=0
    _
  %s6 = ssub.s32 1, %s4
  %s7 = scalar_select 0, %s6, %s4
  $region1: #{value_net_forward.1} parent=0
    #allocation2 [shape = 'u8[8192]{0}', space=vmem, size = 0x2000, scoped, tag = 'output window, operand 0, single buffered']
    // Predicated region
    $region2: #{value_net_forward.1} parent=1 // pred_check
      _
    $region3: #{value_net_forward.1} parent=1 // pred_check_branch
      %9 = sbr.rel (0) target = $region5
    $region4: #{value_net_forward.1} parent=1 // pred_region
      _
    $region5: #{value_net_forward.1} parent=1 // pred_fallthru
      _
    // Predicated region
    $region6: #{value_net_forward.1} parent=1 // pred_check
      _
    $region7: #{value_net_forward.1} parent=1 // pred_check_branch
      %11 = sbr.rel (0) target = $region9
    $region8: #{value_net_forward.1} parent=1 // pred_region
      _
    $region9: #{value_net_forward.1} parent=1 // pred_fallthru
      _
    // Predicated region
    $region10: #{value_net_forward.1} parent=1 // pred_check
      _
    $region11: #{value_net_forward.1} parent=1 // pred_check_branch
      %13 = sbr.rel (0) target = $region13
    $region12: #{value_net_forward.1} parent=1 // pred_region
      _
    $region13: #{value_net_forward.1} parent=1 // pred_fallthru
      _
    %v15 = vld [vmem:[%s0] sm:$0xf]
    %v16 = vld [vmem:[%s0 + $0x4] sm:$0xf]
    %v17 = vld [vmem:[%s1] sm:$0xf]
    %v18 = vld [vmem:[%s1 + $0x4] sm:$0xf]
    %v19 = vld [vmem:[%s2] sm:$0x3]
    %v20 = vperm.slane %v19, 0
    %v23 = vunpack.c.l.b16 %v15
    %v24 = vunpack.c.l.b16 %v16
    %v25 = vpack.c.b16 %v24, %v23
    %v28 = vunpack.c.l.b16 %v17
    %v29 = vunpack.c.l.b16 %v18
    %v30 = vpack.c.b16 %v29, %v28
    %vm32 = vcmask 130048
    %v34 = vsel %vm32, %v25, 0
    %36 = vmatpush.bf16.msra.mxu0 0
    %37 = vmatpush.bf16.msra.mxu0 0
    %38 = vmatpush.bf16.msra.mxu0 0
    %39 = vmatpush.bf16.msra.mxu0 0
    %40 = vmatpush.bf16.msra.mxu0 0
    %41 = vmatpush.bf16.msra.mxu0 0
    %42 = vmatpush.bf16.msra.mxu0 0
    %43 = vmatpush.bf16.msra.mxu0 %v30
    %44 = vmatmul.bf16.gmra.mxu0 %v34
    %v45 = vpop.f32.mrf.mxu0
    %v46 = vadd.f32 %v20, %v45
    %v47 = vpop.f32.mrf.mxu0
    %v48 = vadd.f32 %v20, %v47
    %49 = vdwg.mxu0
    %v50 = vmax.f32 %v46, 0.0
    %v51 = vmax.f32 %v48, 0.0
    %v52 = vperm.slane %v19, 1
    %v53 = vmul.f32 %v50, %v52
    %v54 = vmul.f32 %v51, %v52
    %vm55 = vcmask 261120
    %v56 = vsel %vm55, %v53, 0.0
    %57 = vadd.xlane.f32.xlu0 %v56
    %v58 = vpop.xlane.xlu0 %57
    %v59 = vsel %vm55, %v54, 0.0
    %60 = vadd.xlane.f32.xlu0 %v59
    %v61 = vpop.xlane.xlu0 %60
    %v62 = vadd.f32 %v58, %v20
    %v63 = vadd.f32 %v61, %v20
    %66 = vrot.lane.b32.xlu0 %v62, 96
    %v67 = vpop.permute.xlu0 %66
    %68 = vrot.lane.b32.xlu0 %v63, 96
    %v69 = vpop.permute.xlu0 %68
    %vm72 = vcmask 7168
    %73 = vst.msk [vmem:[#allocation2] sm:$0xff] %vm72, %v67
    %74 = vst.msk [vmem:[#allocation2 + $0x8] sm:$0xff] %vm72, %v69
    // Predicated region
    $region14: #{value_net_forward.1} parent=1 // pred_check
      _
    $region15: #{value_net_forward.1} parent=1 // pred_check_branch
      %76 = sbr.rel (0) target = $region17
    $region16: #{value_net_forward.1} parent=1 // pred_region
      // Predicated region
      $region18: #{value_net_forward.1} parent=16 // pred_check
        _
      $region19: #{value_net_forward.1} parent=16 // pred_check_branch
        %78 = sbr.rel (0) target = $region21
      $region20: #{value_net_forward.1} parent=16 // pred_region
        // Predicated region
        $region22: #{value_net_forward.1} parent=20 // pred_check
          _
        $region23: #{value_net_forward.1} parent=20 // pred_check_branch
          %80 = sbr.rel (0) target = $region25
        $region24: #{value_net_forward.1} parent=20 // pred_region
          // Predicated region
          $region37: #{value_net_forward.1} parent=24 // pred_check
            _
          $region38: #{value_net_forward.1} parent=24 // pred_check_branch
            %96 = sbr.rel (0) target = $region40
          $region39: #{value_net_forward.1} parent=24 // pred_region
            loop: start=0, step=1, limit=1
            $region41: #{value_net_forward.1} parent=39 // loop_pre_header
              _
            $region42: #{value_net_forward.1} parent=39 // loop_header
              %s98 = sphi 0, %s102
              %p99 = scmp.ge.s32.totalorder %s98, 1
              %s103 = sphi [#allocation2], [#allocation2]
              %s104 = sphi %s3, %s3
            $region43: #{value_net_forward.1} parent=39 // loop_header_branch
              %101 = sbr.rel (%p99) target = $region47
            $region44: #{value_net_forward.1} parent=39 // loop_body
              %v105 = vld [vmem:[%s103] sm:$0xff]
              %106 = vst [vmem:[%s104] sm:$0xff] %v105
            $region45: #{value_net_forward.1} parent=39 // loop_footer
              %s102 = sadd.s32 1, %s98
            $region46: #{value_net_forward.1} parent=39 // loop_footer_branch
              %97 = sbr.rel target = $region42
            $region47: #{value_net_forward.1} parent=39 // loop_exit
              _
          $region40: #{value_net_forward.1} parent=24 // pred_fallthru
            _
          // Predicated region
          $region48: #{value_net_forward.1} parent=24 // pred_check
            _
          $region49: #{value_net_forward.1} parent=24 // pred_check_branch
            %108 = sbr.rel target = $region51
          $region50: #{value_net_forward.1} parent=24 // pred_region
            _
          $region51: #{value_net_forward.1} parent=24 // pred_fallthru
            _
        $region25: #{value_net_forward.1} parent=20 // pred_fallthru
          _
        // Predicated region
        $region26: #{value_net_forward.1} parent=20 // pred_check
          _
        $region27: #{value_net_forward.1} parent=20 // pred_check_branch
          %82 = sbr.rel target = $region29
        $region28: #{value_net_forward.1} parent=20 // pred_region
          %s84 = ssub.s32 256, 1
          loop: start=0, step=1, limit=1
          $region30: #{value_net_forward.1} parent=28 // loop_pre_header
            _
          $region31: #{value_net_forward.1} parent=28 // loop_header
            %s86 = sphi 0, %s90
            %p87 = scmp.ge.s32.totalorder %s86, 1
            %s91 = sphi [#allocation2], [#allocation2]
            %s92 = sphi %s3, %s3
          $region32: #{value_net_forward.1} parent=28 // loop_header_branch
            %89 = sbr.rel (%p87) target = $region36
          $region33: #{value_net_forward.1} parent=28 // loop_body
            %v93 = vld [vmem:[%s91] sm:%s84]
            %94 = vst [vmem:[%s92] sm:%s84] %v93
          $region34: #{value_net_forward.1} parent=28 // loop_footer
            %s90 = sadd.s32 1, %s86
          $region35: #{value_net_forward.1} parent=28 // loop_footer_branch
            %85 = sbr.rel target = $region31
          $region36: #{value_net_forward.1} parent=28 // loop_exit
            _
        $region29: #{value_net_forward.1} parent=20 // pred_fallthru
          _
      $region21: #{value_net_forward.1} parent=16 // pred_fallthru
        _
      %109 = vnop
    $region17: #{value_net_forward.1} parent=1 // pred_fallthru
      _
    // Predicated region
    $region52: #{value_net_forward.1} parent=1 // pred_check
      _
    $region53: #{value_net_forward.1} parent=1 // pred_check_branch
      %111 = sbr.rel (0) target = $region55
    $region54: #{value_net_forward.1} parent=1 // pred_region
      _
    $region55: #{value_net_forward.1} parent=1 // pred_fallthru
      _

</llo_original>
